<compile_context>
chip_gen: v7x
topology: tpu7x:2x2x1
jax: 0.10.0
libtpu: 0.0.40
codegen_flags: <defaults>
</compile_context>

<pallas_src>
import functools

import jax
import jax.numpy as jnp
from jax.experimental import pallas as pl
from jax.experimental.pallas import tpu as pltpu

_OUT_LANES = 128  # lane-dense output slab width (multiple of 128 -> unmasked stores)


def _round_up(x, m):
    return ((x + m - 1) // m) * m


def _rotate_kernel(head_ref, rel_ref, tail_ref, out_ref, *,
                   half_dim, phase_scale, mode, margin):
    D = half_dim
    re_head = head_ref[:, :D]
    im_head = head_ref[:, D:]
    re_tail = tail_ref[:, :D]
    im_tail = tail_ref[:, D:]

    # phase_relation = relation / (embedding_range / embedding_dim / pi)
    #                = relation * (embedding_dim * pi / embedding_range)
    phase = rel_ref[...] * phase_scale
    re_rel = jnp.cos(phase)   # EUP
    im_rel = jnp.sin(phase)   # EUP

    if mode == "head-batch":
        re_score = re_rel * re_tail + im_rel * im_tail - re_head
        im_score = re_rel * im_tail - im_rel * re_tail - im_head
    else:  # 'tail-batch' / default
        re_score = re_head * re_rel - im_head * im_rel - re_tail
        im_score = re_head * im_rel + im_head * re_rel - im_tail

    # torch.stack([re, im], 0).norm(dim=0) == sqrt(re^2 + im^2), then sum(dim=2)
    score = jnp.sqrt(re_score * re_score + im_score * im_score)
    row = jnp.sum(score, axis=-1, keepdims=True)        # (TM, 1)
    if margin is not None:
        row = margin - row

    # Lane-dense store: broadcast the per-row scalar across the 128-lane slab so
    # the store is a full unmasked vst (the wrapper extracts column 0).
    out_ref[...] = jnp.broadcast_to(row, (row.shape[0], _OUT_LANES))


def _choose_block_rows(M, D, block_rows=None):
    """Pick a row-tile size whose double-buffered VMEM footprint is ~16 MiB."""
    if block_rows is None:
        row_bytes = (5 * D + _OUT_LANES) * 4     # head + tail + relation + out slab (f32)
        budget = 8 * 1024 * 1024                 # x2 for double buffering ~= 16 MiB live
        block_rows = max(8, min(2048, budget // row_bytes))
    tm = max(8, (int(block_rows) // 8) * 8)      # sublane-aligned
    tm = min(tm, _round_up(M, 8))                # don't over-pad tiny problems
    return int(tm)


def rotate_forward(head, relation, tail, mode,
                   *, margin=None,
                   self_embedding_range=11.0, self_embedding_dim=512,
                   args_gamma=12.0, args_target_dim=32,
                   block_rows=None):
    """Pallas implementation of RotatE.forward.

    head, tail : [B, N, 2*D] float32
    relation   : [B, N, D]   float32
    returns    : [B, N]      float32
    """
    pi = 3.141592653589793
    B, N, full_dim = head.shape
    assert full_dim % 2 == 0
    D = full_dim // 2
    assert relation.shape == (B, N, D)
    assert tail.shape == (B, N, full_dim)

    # Branch on head.shape[-1] exactly like the PyTorch module.
    if full_dim > 500:
        embedding_range, embedding_dim = self_embedding_range, self_embedding_dim
    else:
        embedding_range, embedding_dim = (2.0 + args_gamma, args_target_dim)
    phase_scale = float(embedding_dim * pi / embedding_range)

    M = B * N
    head2 = head.reshape(M, full_dim).astype(jnp.float32)
    rel2 = relation.reshape(M, D).astype(jnp.float32)
    tail2 = tail.reshape(M, full_dim).astype(jnp.float32)

    TM = _choose_block_rows(M, D, block_rows)
    num_tiles = pl.cdiv(M, TM)
    Mp = num_tiles * TM
    if Mp != M:
        pad = Mp - M
        head2 = jnp.pad(head2, ((0, pad), (0, 0)))
        rel2 = jnp.pad(rel2, ((0, pad), (0, 0)))
        tail2 = jnp.pad(tail2, ((0, pad), (0, 0)))

    kernel = functools.partial(
        _rotate_kernel,
        half_dim=D,
        phase_scale=phase_scale,
        mode=mode,
        margin=margin,
    )

    # ~0.7 flop/byte -> memory bound; advisory estimate for the XLA scheduler.
    cost = pl.CostEstimate(
        flops=int(13 * M * D),
        transcendentals=int(3 * M * D),
        bytes_accessed=int(20 * M * D + 4 * M * _OUT_LANES),
    )

    out = pl.pallas_call(
        kernel,
        out_shape=jax.ShapeDtypeStruct((Mp, _OUT_LANES), jnp.float32),
        grid_spec=pltpu.PrefetchScalarGridSpec(
            num_scalar_prefetch=0,
            grid=(num_tiles,),
            in_specs=[
                pl.BlockSpec((TM, full_dim), lambda i: (i, 0)),
                pl.BlockSpec((TM, D), lambda i: (i, 0)),
                pl.BlockSpec((TM, full_dim), lambda i: (i, 0)),
            ],
            out_specs=pl.BlockSpec((TM, _OUT_LANES), lambda i: (i, 0)),
        ),
        compiler_params=pltpu.CompilerParams(
            dimension_semantics=("parallel",),
            vmem_limit_bytes=40 * 1024 * 1024,
        ),
        cost_estimate=cost,
    )(head2, rel2, tail2)

    return out[:M, 0].reshape(B, N)


def _reference(head, relation, tail, mode, *, margin,
               args_gamma, args_target_dim):
    pi = 3.141592653589793
    D = head.shape[-1] // 2
    re_head, im_head = head[..., :D], head[..., D:]
    re_tail, im_tail = tail[..., :D], tail[..., D:]
    if head.shape[-1] > 500:
        embedding_range, embedding_dim = 11.0, 512
    else:
        embedding_range, embedding_dim = (2.0 + args_gamma, args_target_dim)
    phase = relation / (embedding_range / embedding_dim / pi)
    re_rel, im_rel = jnp.cos(phase), jnp.sin(phase)
    if mode == "head-batch":
        re_score = re_rel * re_tail + im_rel * im_tail - re_head
        im_score = re_rel * im_tail - im_rel * re_tail - im_head
    else:
        re_score = re_head * re_rel - im_head * im_rel - re_tail
        im_score = re_head * im_rel + im_head * re_rel - im_tail
    score = jnp.sqrt(re_score**2 + im_score**2).sum(axis=2)
    if margin is not None:
        score = margin - score
    return score


if __name__ == "__main__":
    key = jax.random.PRNGKey(0)
    gamma, target_dim = 12.0, 32
    ok = True

    def _check(head, relation, tail, mode, margin, block_rows=None):
        out = rotate_forward(head, relation, tail, mode,
                             margin=margin,
                             args_gamma=gamma, args_target_dim=target_dim,
                             block_rows=block_rows)
        out = jax.block_until_ready(out)
        ref = _reference(head, relation, tail, mode, margin=margin,
                         args_gamma=gamma, args_target_dim=target_dim)
        return bool(jnp.allclose(out, ref, atol=1e-2, rtol=1e-3))

    # Small-D branch (feature dim 64 <= 500): batch=2, samples=8, D=32.
    B, N, D = 2, 8, 32
    k1, k2, k3 = jax.random.split(key, 3)
    head = jax.random.normal(k1, (B, N, 2 * D), dtype=jnp.float32)
    relation = jax.random.normal(k2, (B, N, D), dtype=jnp.float32)
    tail = jax.random.normal(k3, (B, N, 2 * D), dtype=jnp.float32)
    for mode in ("tail-batch", "head-batch"):
        ok &= _check(head, relation, tail, mode, margin=9.0)

    # Multi-tile + padding path: M=200 rows with a forced 64-row block (grid of 4).
    B2, N2 = 4, 50
    k4, k5, k6 = jax.random.split(jax.random.PRNGKey(1), 3)
    head2 = jax.random.normal(k4, (B2, N2, 2 * D), dtype=jnp.float32)
    relation2 = jax.random.normal(k5, (B2, N2, D), dtype=jnp.float32)
    tail2 = jax.random.normal(k6, (B2, N2, 2 * D), dtype=jnp.float32)
    ok &= _check(head2, relation2, tail2, "tail-batch", margin=9.0, block_rows=64)

    # Large-D branch (feature dim 512 > 500) with margin=None.
    B3, N3, D3 = 2, 4, 256
    k7, k8, k9 = jax.random.split(jax.random.PRNGKey(2), 3)
    head3 = jax.random.normal(k7, (B3, N3, 2 * D3), dtype=jnp.float32)
    relation3 = jax.random.normal(k8, (B3, N3, D3), dtype=jnp.float32)
    tail3 = jax.random.normal(k9, (B3, N3, 2 * D3), dtype=jnp.float32)
    ok &= _check(head3, relation3, tail3, "head-batch", margin=None)

    if ok:
        print("KERNEL_OK")
</pallas_src>

<mosaic_0001>
module attributes {stable_mosaic.version = 11 : i64} {
  func.func @_rotate_kernel(%arg0: i32, %arg1: memref<16x64xf32, #tpu.memory_space<vmem>>, %arg2: memref<16x32xf32, #tpu.memory_space<vmem>>, %arg3: memref<16x64xf32, #tpu.memory_space<vmem>>, %arg4: memref<16x128xf32, #tpu.memory_space<vmem>>) attributes {dimension_semantics = [#tpu.dimension_semantics<parallel>], iteration_bounds = array<i64: 1>, scalar_prefetch = 0 : i64, scratch_operands = 0 : i64, tpu.core_type = #tpu.core_type<tc>, window_params = [{transform_indices = @transform_0, window_bounds = array<i64: 16, 64>}, {transform_indices = @transform_1, window_bounds = array<i64: 16, 32>}, {transform_indices = @transform_2, window_bounds = array<i64: 16, 64>}, {transform_indices = @transform_3, window_bounds = array<i64: 16, 128>}]} {
    %c0 = arith.constant 0 : index
    %c0_0 = arith.constant 0 : index
    %0 = vector.load %arg1[%c0, %c0_0] : memref<16x64xf32, #tpu.memory_space<vmem>>, vector<16x32xf32>
    %c0_1 = arith.constant 0 : index
    %c32 = arith.constant 32 : index
    %1 = vector.load %arg1[%c0_1, %c32] : memref<16x64xf32, #tpu.memory_space<vmem>>, vector<16x32xf32>
    %c0_2 = arith.constant 0 : index
    %c0_3 = arith.constant 0 : index
    %2 = vector.load %arg3[%c0_2, %c0_3] : memref<16x64xf32, #tpu.memory_space<vmem>>, vector<16x32xf32>
    %c0_4 = arith.constant 0 : index
    %c32_5 = arith.constant 32 : index
    %3 = vector.load %arg3[%c0_4, %c32_5] : memref<16x64xf32, #tpu.memory_space<vmem>>, vector<16x32xf32>
    %c0_6 = arith.constant 0 : index
    %c0_7 = arith.constant 0 : index
    %4 = vector.load %arg2[%c0_6, %c0_7] : memref<16x32xf32, #tpu.memory_space<vmem>>, vector<16x32xf32>
    %cst = arith.constant 7.18078327 : f32
    %5 = vector.broadcast %cst : f32 to vector<16x32xf32>
    %6 = arith.mulf %4, %5 : vector<16x32xf32>
    %7 = math.cos %6 : vector<16x32xf32>
    %8 = math.sin %6 : vector<16x32xf32>
    %9 = arith.mulf %0, %7 : vector<16x32xf32>
    %10 = arith.mulf %1, %8 : vector<16x32xf32>
    %11 = arith.subf %9, %10 : vector<16x32xf32>
    %12 = arith.subf %11, %2 : vector<16x32xf32>
    %13 = arith.mulf %0, %8 : vector<16x32xf32>
    %14 = arith.mulf %1, %7 : vector<16x32xf32>
    %15 = arith.addf %13, %14 : vector<16x32xf32>
    %16 = arith.subf %15, %3 : vector<16x32xf32>
    %17 = arith.mulf %12, %12 : vector<16x32xf32>
    %18 = arith.mulf %16, %16 : vector<16x32xf32>
    %19 = arith.addf %17, %18 : vector<16x32xf32>
    %20 = math.sqrt %19 : vector<16x32xf32>
    %cst_8 = arith.constant dense<0.000000e+00> : vector<16xf32>
    %21 = vector.multi_reduction <add>, %20, %cst_8 [1] : vector<16x32xf32> to vector<16xf32>
    %22 = vector.shape_cast %21 : vector<16xf32> to vector<16x1xf32>
    %cst_9 = arith.constant 9.000000e+00 : f32
    %23 = vector.broadcast %cst_9 : f32 to vector<16x1xf32>
    %24 = arith.subf %23, %22 : vector<16x1xf32>
    %25 = vector.shape_cast %24 : vector<16x1xf32> to vector<16x1xf32>
    %26 = vector.broadcast %25 : vector<16x1xf32> to vector<16x128xf32>
    %c0_10 = arith.constant 0 : index
    %c0_11 = arith.constant 0 : index
    %27 = vector.load %arg4[%c0_10, %c0_11] : memref<16x128xf32, #tpu.memory_space<vmem>>, vector<16x128xf32>
    tpu.vector_store %arg4[%c0_10, %c0_11], %26 {strides = array<i32>} : memref<16x128xf32, #tpu.memory_space<vmem>>, vector<16x128xf32>,
    return
  }
  func.func @transform_0(%arg0: i32) -> (i32, i32) {
    %c0_i32 = arith.constant 0 : i32
    %c0_i32_0 = arith.constant 0 : i32
    return %arg0, %c0_i32 : i32, i32
  }
  func.func @transform_1(%arg0: i32) -> (i32, i32) {
    %c0_i32 = arith.constant 0 : i32
    %c0_i32_0 = arith.constant 0 : i32
    return %arg0, %c0_i32 : i32, i32
  }
  func.func @transform_2(%arg0: i32) -> (i32, i32) {
    %c0_i32 = arith.constant 0 : i32
    %c0_i32_0 = arith.constant 0 : i32
    return %arg0, %c0_i32 : i32, i32
  }
  func.func @transform_3(%arg0: i32) -> (i32, i32) {
    %c0_i32 = arith.constant 0 : i32
    %c0_i32_0 = arith.constant 0 : i32
    return %arg0, %c0_i32 : i32, i32
  }
}

</mosaic_0001>

<llo_original>
// kernel: tpu_custom_call.1
$region0: #{tpu_custom_call.1}
  #allocation0 [shape = 'u32[]', space=smem, size = 0x4, offset = 0x4, fixed_abs, tag = 'smem constant byte address 0x4 - core index']
  #allocation1 [shape = 'u32[144,128]{1,0:T(1,128)}', space=vmem, size = 0x12000, scoped, tag = 'internal scratch']
  %s0 = inlined_call_operand.hbm [shape: f32[16,64], index: 0, kind: input, shape index: {}]
  %s1 = inlined_call_operand.hbm [shape: f32[16,32], index: 1, kind: input, shape index: {}]
  %s2 = inlined_call_operand.hbm [shape: f32[16,64], index: 2, kind: input, shape index: {}]
  %s3 = inlined_call_operand.hbm [shape: f32[16,128], index: 3, kind: output, shape index: {}]
  %s4 = sld [smem:[#allocation0]]
  $region34: #{tpu_custom_call.1} parent=0
    _
  %s6 = ssub.s32 1, %s4
  %s7 = scalar_select 0, %s6, %s4
  $region1: #{tpu_custom_call.1} parent=0
    #allocation2 [shape = 'u8[8192]{0}', space=vmem, size = 0x2000, scoped, tag = 'input window, operand 0, single buffered']
    #allocation3 [shape = 's32[1]{0}', space=sflag, size = 0x4, scoped, tag = 'scoped memory for tpu_custom_call.1']
    #allocation4 [shape = 's32[1]{0}', space=sflag, size = 0x4, scoped, tag = 'scoped memory for tpu_custom_call.1']
    #allocation5 [shape = 'u8[8192]{0}', space=vmem, size = 0x2000, scoped, tag = 'input window, operand 1, single buffered']
    #allocation6 [shape = 's32[1]{0}', space=sflag, size = 0x4, scoped, tag = 'scoped memory for tpu_custom_call.1']
    #allocation7 [shape = 'u8[8192]{0}', space=vmem, size = 0x2000, scoped, tag = 'input window, operand 2, single buffered']
    #allocation8 [shape = 'u8[8192]{0}', space=vmem, size = 0x2000, scoped, tag = 'output window, operand 0, single buffered']
    %8 = vsyncpa [#allocation3], 0
    %9 = vsyncpa [#allocation6], 0
    %10 = vsyncpa [#allocation4], 0
    // Predicated region
    $region2: #{tpu_custom_call.1} parent=1 // pred_check
      _
    $region3: #{tpu_custom_call.1} parent=1 // pred_check_branch
      %12 = sbr.rel (0) target = $region5
    $region4: #{tpu_custom_call.1} parent=1 // pred_region
      %s14 = ssub.s32 256, 256
      %15 = vsyncadd [#allocation3], %s14
      %s16 = sshll.u32 [#allocation2], 4
      %s17 = int_to_ptr.vmem [resolvable:$true] %s16
      %22 = dma.hbm_to_vmem [thread:$0]  %s0, 256, %s17, [#allocation3], 128, 128, 8
    $region5: #{tpu_custom_call.1} parent=1 // pred_fallthru
      _
    // Predicated region
    $region6: #{tpu_custom_call.1} parent=1 // pred_check
      _
    $region7: #{tpu_custom_call.1} parent=1 // pred_check_branch
      %24 = sbr.rel (0) target = $region9
    $region8: #{tpu_custom_call.1} parent=1 // pred_region
      %s26 = ssub.s32 256, 256
      %27 = vsyncadd [#allocation6], %s26
      %s28 = sshll.u32 [#allocation5], 4
      %s29 = int_to_ptr.vmem [resolvable:$true] %s28
      %34 = dma.hbm_to_vmem [thread:$0]  %s1, 256, %s29, [#allocation6], 128, 128, 8
    $region9: #{tpu_custom_call.1} parent=1 // pred_fallthru
      _
    // Predicated region
    $region10: #{tpu_custom_call.1} parent=1 // pred_check
      _
    $region11: #{tpu_custom_call.1} parent=1 // pred_check_branch
      %36 = sbr.rel (0) target = $region13
    $region12: #{tpu_custom_call.1} parent=1 // pred_region
      %s38 = ssub.s32 256, 256
      %39 = vsyncadd [#allocation6], %s38
      %s40 = sshll.u32 [#allocation7], 4
      %s41 = int_to_ptr.vmem [resolvable:$true] %s40
      %46 = dma.hbm_to_vmem [thread:$0]  %s2, 256, %s41, [#allocation6], 128, 128, 8
    $region13: #{tpu_custom_call.1} parent=1 // pred_fallthru
      _
    // Predicated region
    $region14: #{tpu_custom_call.1} parent=1 // pred_check
      _
    $region15: #{tpu_custom_call.1} parent=1 // pred_check_branch
      %48 = sbr.rel (0) target = $region17
    $region16: #{tpu_custom_call.1} parent=1 // pred_region
      %49 = dma.done [#allocation3], 256
    $region17: #{tpu_custom_call.1} parent=1 // pred_fallthru
      _
    // Predicated region
    $region18: #{tpu_custom_call.1} parent=1 // pred_check
      _
    $region19: #{tpu_custom_call.1} parent=1 // pred_check_branch
      %51 = sbr.rel (0) target = $region21
    $region20: #{tpu_custom_call.1} parent=1 // pred_region
      %52 = dma.done [#allocation6], 256
    $region21: #{tpu_custom_call.1} parent=1 // pred_fallthru
      _
    // Predicated region
    $region22: #{tpu_custom_call.1} parent=1 // pred_check
      _
    $region23: #{tpu_custom_call.1} parent=1 // pred_check_branch
      %54 = sbr.rel (0) target = $region25
    $region24: #{tpu_custom_call.1} parent=1 // pred_region
      %55 = dma.done [#allocation6], 256
    $region25: #{tpu_custom_call.1} parent=1 // pred_fallthru
      _
    %v56 = vld [vmem:[#allocation2] sm:$0xff]
    %v57 = vld [vmem:[#allocation2 + $0x8] sm:$0xff]
    %v58 = vld [vmem:[#allocation7] sm:$0xff]
    %v59 = vld [vmem:[#allocation7 + $0x8] sm:$0xff]
    %v60 = vld [vmem:[#allocation5] sm:$0xff]
    %v61 = vld [vmem:[#allocation5 + $0x8] sm:$0xff]
    %v62 = vmul.f32 %v60, 7.1807833
    %v63 = vmul.f32 %v61, 7.1807833
    %v64 = vand.u32 2147483647, %v62
    %vm65 = vcmp.le.f32.partialorder %v64, 0.7853982
    %vm66 = vcmp.lt.s32.totalorder %v62, 0
    %v67 = vand.u32 %v62, 2139095040
    %v68 = vshrl.u32 %v67, 23
    %v69 = vsub.s32 %v68, 127
    %v70 = vand.u32 2147483647, %v62
    %v71 = vand.u32 %v70, 8388607
    %v72 = vor.u32 %v71, 8388608
    %v73 = vsub.s32 0, %v72
    %v74 = vadd.s32 %v69, 1
    %vm75 = vcmp.gt.s32.totalorder %v74, 0
    %v76 = vsel %vm75, %v74, 0
    %v77 = vshrl.u32 %v76, 5
    %v78 = vand.u32 %v76, 31
    %v79 = vsub.s32 32, %v78
    %v80 = vshrl.u32 683565275, %v79
    %v81 = vshll.u32 683565275, %v78
    %v82 = vshrl.u32 2475754826, %v79
    %v83 = vor.u32 %v81, %v82
    %v84 = vshll.u32 2475754826, %v78
    %v85 = vshrl.u32 2131351028, %v79
    %v86 = vor.u32 %v84, %v85
    %v87 = vshll.u32 2131351028, %v78
    %v88 = vshrl.u32 2102212464, %v79
    %v89 = vor.u32 %v87, %v88
    %v90 = vshll.u32 2102212464, %v78
    %v91 = vshrl.u32 920167782, %v79
    %v92 = vor.u32 %v90, %v91
    %v93 = vshll.u32 920167782, %v78
    %v94 = vshrl.u32 1326507024, %v79
    %v95 = vor.u32 %v93, %v94
    %vm96 = vcmp.lt.s32.totalorder %v77, 1
    %vm97 = vcmp.lt.s32.totalorder %v77, 2
    %vm98 = vcmp.lt.s32.totalorder %v77, 3
    %vm99 = vcmp.lt.s32.totalorder %v77, 4
    %v100 = vsel %vm96, %v80, %v83
    %v101 = vsel %vm99, %v89, 2102212464
    %v102 = vsel %vm98, %v86, %v101
    %v103 = vsel %vm97, %v100, %v102
    %v104 = vsel %vm96, %v83, %v86
    %v105 = vsel %vm99, %v92, 920167782
    %v106 = vsel %vm98, %v89, %v105
    %v107 = vsel %vm97, %v104, %v106
    %v108 = vsel %vm96, %v86, %v89
    %v109 = vsel %vm99, %v95, 1326507024
    %v110 = vsel %vm98, %v92, %v109
    %v111 = vsel %vm97, %v108, %v110
    %v112 = vshll.u32 %v72, 8
    %v113 = vmul.u32.u64.compose %v112, %v111
    %v114 = vextract.low.u32 %v113
    %v115 = vextract.high.u32 %v113
    %v116 = vmul.u32.u64.compose %v112, %v107
    %v117 = vextract.low.u32 %v116
    %v118 = vextract.high.u32 %v116
    %v119 = vmul.u32 %v112, %v103
    %v120 = vadd.s32 %v115, %v117
    %vm121 = vc.u32 %v115, %v117
    %v122 = vadd.s32 %v118, 1
    %v123 = vsel %vm121, %v122, %v118
    %v124 = vadd.s32 %v119, %v123
    %v125 = vadd.s32 %v124, 536870912
    %v126 = vshrl.u32 %v125, 30
    %v127 = vshll.u32 %v126, 30
    %v128 = vsub.s32 %v124, %v127
    %vm129 = vcmp.lt.s32.totalorder %v128, 0
    %v130 = vsub.s32 0, %v128
    %v131 = vsel %vm129, %v130, %v128
    %v132 = vclz %v131
    %v133 = vsub.s32 %v132, 2
    %vm134 = vcmp.gt.s32.totalorder 0, %v133
    %v135 = vsel %vm134, 0, %v133
    %v136 = vsub.s32 32, %v135
    %v137 = vshll.u32 %v128, %v135
    %v138 = vshrl.u32 %v120, %v136
    %v139 = vor.u32 %v137, %v138
    %v140 = vsub.s32 4294967266, %v135
    %v141 = vadd.s32 %v140, 127
    %v142 = vshll.u32 %v141, 23
    %v143 = vor.u32 4788187, %v142
    %v144 = vand.u32 2147483647, %v143
    %v146 = vcvt.s32.f32 %v139
    %v147 = vmul.f32 %v146, %v144
    %v148 = vxor.u32 %v147, 2147483648
    %v149 = vsel %vm66, %v148, %v147
    %v150 = vsub.s32 4, %v126
    %v151 = vsel %vm66, %v150, %v126
    %v152 = vsel %vm65, %v62, %v149
    %v153 = vsel %vm65, 0, %v151
    %v154 = vcosq.f32.pop %v152
    %v155 = vsinq.f32.pop %v152
    %vm156 = vweird.f32 %v62
    %v157 = vand.u32 %v153, 3
    %vm158 = vcmp.lt.s32.totalorder %v157, 2
    %vm159 = vcmp.eq.s32.totalorder %v157, 0
    %v160 = vxor.u32 %v155, 2147483648
    %v161 = vsel %vm159, %v154, %v160
    %vm162 = vcmp.eq.s32.totalorder %v157, 2
    %v163 = vxor.u32 %v154, 2147483648
    %v164 = vsel %vm162, %v163, %v155
    %v165 = vsel %vm158, %v161, %v164
    %v166 = vsel %vm156, nan, %v165
    %v167 = vand.u32 2147483647, %v63
    %vm168 = vcmp.le.f32.partialorder %v167, 0.7853982
    %vm169 = vcmp.lt.s32.totalorder %v63, 0
    %v170 = vand.u32 %v63, 2139095040
    %v171 = vshrl.u32 %v170, 23
    %v172 = vsub.s32 %v171, 127
    %v173 = vand.u32 2147483647, %v63
    %v174 = vand.u32 %v173, 8388607
    %v175 = vor.u32 %v174, 8388608
    %v176 = vsub.s32 0, %v175
    %v177 = vadd.s32 %v172, 1
    %vm178 = vcmp.gt.s32.totalorder %v177, 0
    %v179 = vsel %vm178, %v177, 0
    %v180 = vshrl.u32 %v179, 5
    %v181 = vand.u32 %v179, 31
    %v182 = vsub.s32 32, %v181
    %v183 = vshrl.u32 683565275, %v182
    %v184 = vshll.u32 683565275, %v181
    %v185 = vshrl.u32 2475754826, %v182
    %v186 = vor.u32 %v184, %v185
    %v187 = vshll.u32 2475754826, %v181
    %v188 = vshrl.u32 2131351028, %v182
    %v189 = vor.u32 %v187, %v188
    %v190 = vshll.u32 2131351028, %v181
    %v191 = vshrl.u32 2102212464, %v182
    %v192 = vor.u32 %v190, %v191
    %v193 = vshll.u32 2102212464, %v181
    %v194 = vshrl.u32 920167782, %v182
    %v195 = vor.u32 %v193, %v194
    %v196 = vshll.u32 920167782, %v181
    %v197 = vshrl.u32 1326507024, %v182
    %v198 = vor.u32 %v196, %v197
    %vm199 = vcmp.lt.s32.totalorder %v180, 1
    %vm200 = vcmp.lt.s32.totalorder %v180, 2
    %vm201 = vcmp.lt.s32.totalorder %v180, 3
    %vm202 = vcmp.lt.s32.totalorder %v180, 4
    %v203 = vsel %vm199, %v183, %v186
    %v204 = vsel %vm202, %v192, 2102212464
    %v205 = vsel %vm201, %v189, %v204
    %v206 = vsel %vm200, %v203, %v205
    %v207 = vsel %vm199, %v186, %v189
    %v208 = vsel %vm202, %v195, 920167782
    %v209 = vsel %vm201, %v192, %v208
    %v210 = vsel %vm200, %v207, %v209
    %v211 = vsel %vm199, %v189, %v192
    %v212 = vsel %vm202, %v198, 1326507024
    %v213 = vsel %vm201, %v195, %v212
    %v214 = vsel %vm200, %v211, %v213
    %v215 = vshll.u32 %v175, 8
    %v216 = vmul.u32.u64.compose %v215, %v214
    %v217 = vextract.low.u32 %v216
    %v218 = vextract.high.u32 %v216
    %v219 = vmul.u32.u64.compose %v215, %v210
    %v220 = vextract.low.u32 %v219
    %v221 = vextract.high.u32 %v219
    %v222 = vmul.u32 %v215, %v206
    %v223 = vadd.s32 %v218, %v220
    %vm224 = vc.u32 %v218, %v220
    %v225 = vadd.s32 %v221, 1
    %v226 = vsel %vm224, %v225, %v221
    %v227 = vadd.s32 %v222, %v226
    %v228 = vadd.s32 %v227, 536870912
    %v229 = vshrl.u32 %v228, 30
    %v230 = vshll.u32 %v229, 30
    %v231 = vsub.s32 %v227, %v230
    %vm232 = vcmp.lt.s32.totalorder %v231, 0
    %v233 = vsub.s32 0, %v231
    %v234 = vsel %vm232, %v233, %v231
    %v235 = vclz %v234
    %v236 = vsub.s32 %v235, 2
    %vm237 = vcmp.gt.s32.totalorder 0, %v236
    %v238 = vsel %vm237, 0, %v236
    %v239 = vsub.s32 32, %v238
    %v240 = vshll.u32 %v231, %v238
    %v241 = vshrl.u32 %v223, %v239
    %v242 = vor.u32 %v240, %v241
    %v243 = vsub.s32 4294967266, %v238
    %v244 = vadd.s32 %v243, 127
    %v245 = vshll.u32 %v244, 23
    %v246 = vor.u32 4788187, %v245
    %v247 = vand.u32 2147483647, %v246
    %v249 = vcvt.s32.f32 %v242
    %v250 = vmul.f32 %v249, %v247
    %v251 = vxor.u32 %v250, 2147483648
    %v252 = vsel %vm169, %v251, %v250
    %v253 = vsub.s32 4, %v229
    %v254 = vsel %vm169, %v253, %v229
    %v255 = vsel %vm168, %v63, %v252
    %v256 = vsel %vm168, 0, %v254
    %v257 = vcosq.f32.pop %v255
    %v258 = vsinq.f32.pop %v255
    %vm259 = vweird.f32 %v63
    %v260 = vand.u32 %v256, 3
    %vm261 = vcmp.lt.s32.totalorder %v260, 2
    %vm262 = vcmp.eq.s32.totalorder %v260, 0
    %v263 = vxor.u32 %v258, 2147483648
    %v264 = vsel %vm262, %v257, %v263
    %vm265 = vcmp.eq.s32.totalorder %v260, 2
    %v266 = vxor.u32 %v257, 2147483648
    %v267 = vsel %vm265, %v266, %v258
    %v268 = vsel %vm261, %v264, %v267
    %v269 = vsel %vm259, nan, %v268
    %v270 = vand.u32 2147483647, %v62
    %vm271 = vcmp.le.f32.partialorder %v270, 0.7853982
    %vm272 = vcmp.lt.s32.totalorder %v62, 0
    %v273 = vand.u32 %v62, 2139095040
    %v274 = vshrl.u32 %v273, 23
    %v275 = vsub.s32 %v274, 127
    %v276 = vand.u32 2147483647, %v62
    %v277 = vand.u32 %v276, 8388607
    %v278 = vor.u32 %v277, 8388608
    %v279 = vsub.s32 0, %v278
    %v280 = vadd.s32 %v275, 1
    %vm281 = vcmp.gt.s32.totalorder %v280, 0
    %v282 = vsel %vm281, %v280, 0
    %v283 = vshrl.u32 %v282, 5
    %v284 = vand.u32 %v282, 31
    %v285 = vsub.s32 32, %v284
    %v286 = vshrl.u32 683565275, %v285
    %v287 = vshll.u32 683565275, %v284
    %v288 = vshrl.u32 2475754826, %v285
    %v289 = vor.u32 %v287, %v288
    %v290 = vshll.u32 2475754826, %v284
    %v291 = vshrl.u32 2131351028, %v285
    %v292 = vor.u32 %v290, %v291
    %v293 = vshll.u32 2131351028, %v284
    %v294 = vshrl.u32 2102212464, %v285
    %v295 = vor.u32 %v293, %v294
    %v296 = vshll.u32 2102212464, %v284
    %v297 = vshrl.u32 920167782, %v285
    %v298 = vor.u32 %v296, %v297
    %v299 = vshll.u32 920167782, %v284
    %v300 = vshrl.u32 1326507024, %v285
    %v301 = vor.u32 %v299, %v300
    %vm302 = vcmp.lt.s32.totalorder %v283, 1
    %vm303 = vcmp.lt.s32.totalorder %v283, 2
    %vm304 = vcmp.lt.s32.totalorder %v283, 3
    %vm305 = vcmp.lt.s32.totalorder %v283, 4
    %v306 = vsel %vm302, %v286, %v289
    %v307 = vsel %vm305, %v295, 2102212464
    %v308 = vsel %vm304, %v292, %v307
    %v309 = vsel %vm303, %v306, %v308
    %v310 = vsel %vm302, %v289, %v292
    %v311 = vsel %vm305, %v298, 920167782
    %v312 = vsel %vm304, %v295, %v311
    %v313 = vsel %vm303, %v310, %v312
    %v314 = vsel %vm302, %v292, %v295
    %v315 = vsel %vm305, %v301, 1326507024
    %v316 = vsel %vm304, %v298, %v315
    %v317 = vsel %vm303, %v314, %v316
    %v318 = vshll.u32 %v278, 8
    %v319 = vmul.u32.u64.compose %v318, %v317
    %v320 = vextract.low.u32 %v319
    %v321 = vextract.high.u32 %v319
    %v322 = vmul.u32.u64.compose %v318, %v313
    %v323 = vextract.low.u32 %v322
    %v324 = vextract.high.u32 %v322
    %v325 = vmul.u32 %v318, %v309
    %v326 = vadd.s32 %v321, %v323
    %vm327 = vc.u32 %v321, %v323
    %v328 = vadd.s32 %v324, 1
    %v329 = vsel %vm327, %v328, %v324
    %v330 = vadd.s32 %v325, %v329
    %v331 = vadd.s32 %v330, 536870912
    %v332 = vshrl.u32 %v331, 30
    %v333 = vshll.u32 %v332, 30
    %v334 = vsub.s32 %v330, %v333
    %vm335 = vcmp.lt.s32.totalorder %v334, 0
    %v336 = vsub.s32 0, %v334
    %v337 = vsel %vm335, %v336, %v334
    %v338 = vclz %v337
    %v339 = vsub.s32 %v338, 2
    %vm340 = vcmp.gt.s32.totalorder 0, %v339
    %v341 = vsel %vm340, 0, %v339
    %v342 = vsub.s32 32, %v341
    %v343 = vshll.u32 %v334, %v341
    %v344 = vshrl.u32 %v326, %v342
    %v345 = vor.u32 %v343, %v344
    %v346 = vsub.s32 4294967266, %v341
    %v347 = vadd.s32 %v346, 127
    %v348 = vshll.u32 %v347, 23
    %v349 = vor.u32 4788187, %v348
    %v350 = vand.u32 2147483647, %v349
    %v352 = vcvt.s32.f32 %v345
    %v353 = vmul.f32 %v352, %v350
    %v354 = vxor.u32 %v353, 2147483648
    %v355 = vsel %vm272, %v354, %v353
    %v356 = vsub.s32 4, %v332
    %v357 = vsel %vm272, %v356, %v332
    %v358 = vsel %vm271, %v62, %v355
    %v359 = vsel %vm271, 0, %v357
    %v360 = vcosq.f32.pop %v358
    %v361 = vsinq.f32.pop %v358
    %vm362 = vweird.f32 %v62
    %v363 = vadd.s32 %v359, 3
    %v364 = vand.u32 %v363, 3
    %vm365 = vcmp.lt.s32.totalorder %v364, 2
    %vm366 = vcmp.eq.s32.totalorder %v364, 0
    %v367 = vxor.u32 %v361, 2147483648
    %v368 = vsel %vm366, %v360, %v367
    %vm369 = vcmp.eq.s32.totalorder %v364, 2
    %v370 = vxor.u32 %v360, 2147483648
    %v371 = vsel %vm369, %v370, %v361
    %v372 = vsel %vm365, %v368, %v371
    %v373 = vsel %vm362, nan, %v372
    %v374 = vand.u32 2147483647, %v63
    %vm375 = vcmp.le.f32.partialorder %v374, 0.7853982
    %vm376 = vcmp.lt.s32.totalorder %v63, 0
    %v377 = vand.u32 %v63, 2139095040
    %v378 = vshrl.u32 %v377, 23
    %v379 = vsub.s32 %v378, 127
    %v380 = vand.u32 2147483647, %v63
    %v381 = vand.u32 %v380, 8388607
    %v382 = vor.u32 %v381, 8388608
    %v383 = vsub.s32 0, %v382
    %v384 = vadd.s32 %v379, 1
    %vm385 = vcmp.gt.s32.totalorder %v384, 0
    %v386 = vsel %vm385, %v384, 0
    %v387 = vshrl.u32 %v386, 5
    %v388 = vand.u32 %v386, 31
    %v389 = vsub.s32 32, %v388
    %v390 = vshrl.u32 683565275, %v389
    %v391 = vshll.u32 683565275, %v388
    %v392 = vshrl.u32 2475754826, %v389
    %v393 = vor.u32 %v391, %v392
    %v394 = vshll.u32 2475754826, %v388
    %v395 = vshrl.u32 2131351028, %v389
    %v396 = vor.u32 %v394, %v395
    %v397 = vshll.u32 2131351028, %v388
    %v398 = vshrl.u32 2102212464, %v389
    %v399 = vor.u32 %v397, %v398
    %v400 = vshll.u32 2102212464, %v388
    %v401 = vshrl.u32 920167782, %v389
    %v402 = vor.u32 %v400, %v401
    %v403 = vshll.u32 920167782, %v388
    %v404 = vshrl.u32 1326507024, %v389
    %v405 = vor.u32 %v403, %v404
    %vm406 = vcmp.lt.s32.totalorder %v387, 1
    %vm407 = vcmp.lt.s32.totalorder %v387, 2
    %vm408 = vcmp.lt.s32.totalorder %v387, 3
    %vm409 = vcmp.lt.s32.totalorder %v387, 4
    %v410 = vsel %vm406, %v390, %v393
    %v411 = vsel %vm409, %v399, 2102212464
    %v412 = vsel %vm408, %v396, %v411
    %v413 = vsel %vm407, %v410, %v412
    %v414 = vsel %vm406, %v393, %v396
    %v415 = vsel %vm409, %v402, 920167782
    %v416 = vsel %vm408, %v399, %v415
    %v417 = vsel %vm407, %v414, %v416
    %v418 = vsel %vm406, %v396, %v399
    %v419 = vsel %vm409, %v405, 1326507024
    %v420 = vsel %vm408, %v402, %v419
    %v421 = vsel %vm407, %v418, %v420
    %v422 = vshll.u32 %v382, 8
    %v423 = vmul.u32.u64.compose %v422, %v421
    %v424 = vextract.low.u32 %v423
    %v425 = vextract.high.u32 %v423
    %v426 = vmul.u32.u64.compose %v422, %v417
    %v427 = vextract.low.u32 %v426
    %v428 = vextract.high.u32 %v426
    %v429 = vmul.u32 %v422, %v413
    %v430 = vadd.s32 %v425, %v427
    %vm431 = vc.u32 %v425, %v427
    %v432 = vadd.s32 %v428, 1
    %v433 = vsel %vm431, %v432, %v428
    %v434 = vadd.s32 %v429, %v433
    %v435 = vadd.s32 %v434, 536870912
    %v436 = vshrl.u32 %v435, 30
    %v437 = vshll.u32 %v436, 30
    %v438 = vsub.s32 %v434, %v437
    %vm439 = vcmp.lt.s32.totalorder %v438, 0
    %v440 = vsub.s32 0, %v438
    %v441 = vsel %vm439, %v440, %v438
    %v442 = vclz %v441
    %v443 = vsub.s32 %v442, 2
    %vm444 = vcmp.gt.s32.totalorder 0, %v443
    %v445 = vsel %vm444, 0, %v443
    %v446 = vsub.s32 32, %v445
    %v447 = vshll.u32 %v438, %v445
    %v448 = vshrl.u32 %v430, %v446
    %v449 = vor.u32 %v447, %v448
    %v450 = vsub.s32 4294967266, %v445
    %v451 = vadd.s32 %v450, 127
    %v452 = vshll.u32 %v451, 23
    %v453 = vor.u32 4788187, %v452
    %v454 = vand.u32 2147483647, %v453
    %v456 = vcvt.s32.f32 %v449
    %v457 = vmul.f32 %v456, %v454
    %v458 = vxor.u32 %v457, 2147483648
    %v459 = vsel %vm376, %v458, %v457
    %v460 = vsub.s32 4, %v436
    %v461 = vsel %vm376, %v460, %v436
    %v462 = vsel %vm375, %v63, %v459
    %v463 = vsel %vm375, 0, %v461
    %v464 = vcosq.f32.pop %v462
    %v465 = vsinq.f32.pop %v462
    %vm466 = vweird.f32 %v63
    %v467 = vadd.s32 %v463, 3
    %v468 = vand.u32 %v467, 3
    %vm469 = vcmp.lt.s32.totalorder %v468, 2
    %vm470 = vcmp.eq.s32.totalorder %v468, 0
    %v471 = vxor.u32 %v465, 2147483648
    %v472 = vsel %vm470, %v464, %v471
    %vm473 = vcmp.eq.s32.totalorder %v468, 2
    %v474 = vxor.u32 %v464, 2147483648
    %v475 = vsel %vm473, %v474, %v465
    %v476 = vsel %vm469, %v472, %v475
    %v477 = vsel %vm466, nan, %v476
    %v478 = vmul.f32 %v56, %v166
    %v479 = vmul.f32 %v57, %v269
    %482 = vrot.lane.b32.xlu0 %v373, 32
    %v483 = vpop.permute.xlu0 %482
    %484 = vrot.lane.b32.xlu0 %v477, 32
    %v485 = vpop.permute.xlu0 %484
    %v488 = vmul.f32 %v56, %v483
    %v489 = vmul.f32 %v57, %v485
    %492 = vrot.lane.b32.xlu0 %v488, 96
    %v493 = vpop.permute.xlu0 %492
    %494 = vrot.lane.b32.xlu0 %v489, 96
    %v495 = vpop.permute.xlu0 %494
    %v498 = vsub.f32 %v478, %v493
    %v499 = vsub.f32 %v479, %v495
    %v500 = vsub.f32 %v498, %v58
    %v501 = vsub.f32 %v499, %v59
    %v502 = vmul.f32 %v56, %v373
    %v503 = vmul.f32 %v57, %v477
    %506 = vrot.lane.b32.xlu0 %v166, 32
    %v507 = vpop.permute.xlu0 %506
    %508 = vrot.lane.b32.xlu0 %v269, 32
    %v509 = vpop.permute.xlu0 %508
    %v512 = vmul.f32 %v56, %v507
    %v513 = vmul.f32 %v57, %v509
    %516 = vrot.lane.b32.xlu0 %v512, 96
    %v517 = vpop.permute.xlu0 %516
    %518 = vrot.lane.b32.xlu0 %v513, 96
    %v519 = vpop.permute.xlu0 %518
    %v522 = vadd.f32 %v502, %v517
    %v523 = vadd.f32 %v503, %v519
    %526 = vrot.lane.b32.xlu0 %v58, 96
    %v527 = vpop.permute.xlu0 %526
    %528 = vrot.lane.b32.xlu0 %v59, 96
    %v529 = vpop.permute.xlu0 %528
    %v532 = vsub.f32 %v522, %v527
    %v533 = vsub.f32 %v523, %v529
    %v534 = vmul.f32 %v500, %v500
    %v535 = vmul.f32 %v501, %v501
    %v536 = vmul.f32 %v532, %v532
    %v537 = vmul.f32 %v533, %v533
    %v538 = vadd.f32 %v534, %v536
    %v539 = vadd.f32 %v535, %v537
    %v540 = vrsqrt.pop %v538
    %v541 = vmul.f32 %v538, %v540
    %vm542 = vcmp.eq.f32.partialorder %v538, inf
    %v543 = vsel %vm542, %v538, %v541
    %vm544 = vcmp.eq.f32.partialorder %v538, 0.0
    %v545 = vand.u32 %v538, 2147483648
    %v546 = vsel %vm544, %v545, %v543
    %v547 = vrsqrt.pop %v539
    %v548 = vmul.f32 %v539, %v547
    %vm549 = vcmp.eq.f32.partialorder %v539, inf
    %v550 = vsel %vm549, %v539, %v548
    %vm551 = vcmp.eq.f32.partialorder %v539, 0.0
    %v552 = vand.u32 %v539, 2147483648
    %v553 = vsel %vm551, %v552, %v550
    %vm554 = vcmask 261120
    %v555 = vsel %vm554, %v546, 0.0
    %556 = vadd.xlane.f32.xlu0 %v555
    %v557 = vpop.xlane.xlu0 %556
    %v558 = vsel %vm554, %v553, 0.0
    %559 = vadd.xlane.f32.xlu0 %v558
    %v560 = vpop.xlane.xlu0 %559
    %v561 = vsub.f32 9.0, %v557
    %v562 = vsub.f32 9.0, %v560
    %563 = vst [vmem:[#allocation8] sm:$0xff] %v561
    %564 = vst [vmem:[#allocation8 + $0x8] sm:$0xff] %v562
    // Predicated region
    $region26: #{tpu_custom_call.1} parent=1 // pred_check
      _
    $region27: #{tpu_custom_call.1} parent=1 // pred_check_branch
      %566 = sbr.rel (0) target = $region29
    $region28: #{tpu_custom_call.1} parent=1 // pred_region
      %s568 = ssub.s32 256, 256
      %569 = vsyncadd [#allocation4], %s568
      %s570 = sshll.u32 [#allocation8], 4
      %s571 = int_to_ptr.vmem [resolvable:$true] %s570
      %576 = dma.vmem_to_hbm [thread:$0]  %s571, 256, %s3, [#allocation4], 128, 128, 8
    $region29: #{tpu_custom_call.1} parent=1 // pred_fallthru
      _
    // Predicated region
    $region30: #{tpu_custom_call.1} parent=1 // pred_check
      _
    $region31: #{tpu_custom_call.1} parent=1 // pred_check_branch
      %578 = sbr.rel (0) target = $region33
    $region32: #{tpu_custom_call.1} parent=1 // pred_region
      %579 = dma.done [#allocation4], 256
    $region33: #{tpu_custom_call.1} parent=1 // pred_fallthru
      _
    %580 = vsyncpa [#allocation3], 1
    %581 = vsyncpa [#allocation6], 1
    %582 = vsyncpa [#allocation4], 1

</llo_original>
